<compile_context>
chip_gen: v5e
topology: v5e:2x2
jax: 0.10.0
libtpu: 0.0.40
codegen_flags: <defaults>
</compile_context>

<pallas_src>
import functools

import jax
import jax.numpy as jnp
from jax.experimental import pallas as pl
from jax.experimental.pallas import tpu as pltpu

LANE = 128
SUBLANE = 8
CHUNK_ROWS = 512          # in-kernel compute chunk: (512, 128) f32 temps = 256 KiB


def _round_up(x, m):
    return ((x + m - 1) // m) * m


def _device_kind():
    try:
        return jax.devices()[0].device_kind.lower()
    except Exception:
        return ""


def _tile_rows_base():
    kind = _device_kind()
    # v5e: 16 MiB scoped-VMEM default and ~820 GB/s HBM -> 2048-row tiles
    # (2 inputs x 2 buffers x 1 MiB = 4 MiB) already sit near roofline.
    if ("v5 lite" in kind) or ("v5lite" in kind) or ("v5e" in kind):
        return 2048
    # v6e / v7x: 32 MiB scoped VMEM; 4096-row f32 tiles move ~4 MiB of HBM
    # traffic per grid step (2 inputs x 2 buffers x 2 MiB = 8 MiB VMEM).
    return 4096


def _num_tensorcores():
    kind = _device_kind()
    # v7x has 2 TensorCores per chip; v5e/v6e have 1. Default to 1 (safe).
    return 2 if "7" in kind else 1


def _wmse_kernel(x_ref, t_ref, out_ref, acc_ref, *,
                 weight_for_white, valid_rows, inner_blocks, tile_rows):
    o = pl.program_id(0)
    i = pl.program_id(1)

    @pl.when(i == 0)
    def _():
        acc_ref[...] = jnp.zeros_like(acc_ref)

    global_block = o * inner_blocks + i
    row0 = global_block * tile_rows
    fits = row0 + tile_rows <= valid_rows   # True for all interior blocks

    def chunk_wse(c0, cr):
        x = x_ref[pl.ds(c0, cr), :]
        t = t_ref[pl.ds(c0, cr), :]
        if x.dtype != jnp.float32:
            x = x.astype(jnp.float32)
        if t.dtype != jnp.float32:
            t = t.astype(jnp.float32)
        d = x - t
        return d * d * (1.0 + t * (weight_for_white - 1.0))

    def reduce_to_acc(wse, cr):
        # (cr, 128) -> (cr//8, 8, 128) -> sum over leading dim: pure VPU adds,
        # keeps the accumulator at a single (8, 128) tile.
        acc_ref[...] += jnp.sum(wse.reshape(cr // SUBLANE, SUBLANE, LANE), axis=0)

    @pl.when(fits)
    def _():
        # Unmasked fast path for interior blocks.
        for c0 in range(0, tile_rows, CHUNK_ROWS):
            cr = min(CHUNK_ROWS, tile_rows - c0)
            reduce_to_acc(chunk_wse(c0, cr), cr)

    @pl.when(jnp.logical_not(fits))
    def _():
        # Overhanging (or clamped duplicate) block: mask invalid rows. The
        # where-select also squashes NaN/Inf garbage in the padded region.
        for c0 in range(0, tile_rows, CHUNK_ROWS):
            cr = min(CHUNK_ROWS, tile_rows - c0)
            wse = chunk_wse(c0, cr)
            local = jax.lax.broadcasted_iota(jnp.int32, (cr, LANE), 0)
            valid = (row0 + c0 + local) < valid_rows
            reduce_to_acc(jnp.where(valid, wse, 0.0), cr)

    @pl.when(i == pl.num_programs(1) - 1)
    def _():
        out_ref[...] = jnp.sum(acc_ref[...], axis=0, keepdims=True)


def weighted_mse_loss(inputs, target, weight_for_white=10.0):
    assert inputs.shape == target.shape
    n_elems = inputs.size
    wfw = float(weight_for_white)

    x_flat = inputs.reshape(-1)
    t_flat = target.reshape(-1)

    rows = n_elems // LANE
    main = rows * LANE

    # <128-element tail: tiny jnp reduction instead of a whole-array pad copy.
    if main < n_elems:
        xt = x_flat[main:].astype(jnp.float32)
        tt = t_flat[main:].astype(jnp.float32)
        dt = xt - tt
        tail_sum = jnp.sum(dt * dt * (1.0 + tt * (wfw - 1.0)))
    else:
        tail_sum = jnp.float32(0.0)

    if rows == 0:
        return tail_sum / jnp.float32(n_elems)

    if main < n_elems:
        x2 = jax.lax.slice(x_flat, (0,), (main,)).reshape(rows, LANE)
        t2 = jax.lax.slice(t_flat, (0,), (main,)).reshape(rows, LANE)
    else:
        x2 = x_flat.reshape(rows, LANE)
        t2 = t_flat.reshape(rows, LANE)

    itemsize = jnp.dtype(inputs.dtype).itemsize
    base_rows = _tile_rows_base()
    if itemsize <= 2:
        base_rows *= 2            # same HBM bytes per step for 16-bit inputs
    tile_rows = min(base_rows, _round_up(rows, SUBLANE))
    blocks_total = pl.cdiv(rows, tile_rows)
    n_outer = min(_num_tensorcores(), blocks_total)
    inner_blocks = pl.cdiv(blocks_total, n_outer)
    last_block = blocks_total - 1

    def in_map(o, i):
        # Clamp so an out-of-range (o, i) still maps to a legal block; its
        # contribution is fully masked inside the kernel.
        return (jnp.minimum(o * inner_blocks + i, last_block), 0)

    kernel = functools.partial(
        _wmse_kernel,
        weight_for_white=wfw,
        valid_rows=rows,
        inner_blocks=inner_blocks,
        tile_rows=tile_rows,
    )

    cost = pl.CostEstimate(
        flops=7 * rows * LANE,
        transcendentals=0,
        bytes_accessed=2 * rows * LANE * itemsize + n_outer * LANE * 4,
    )

    partials = pl.pallas_call(
        kernel,
        out_shape=jax.ShapeDtypeStruct((n_outer, LANE), jnp.float32),
        grid_spec=pltpu.PrefetchScalarGridSpec(
            num_scalar_prefetch=0,
            grid=(n_outer, inner_blocks),
            in_specs=[
                pl.BlockSpec((tile_rows, LANE), in_map),
                pl.BlockSpec((tile_rows, LANE), in_map),
            ],
            out_specs=pl.BlockSpec((1, LANE), lambda o, i: (o, 0)),
            scratch_shapes=[pltpu.VMEM((SUBLANE, LANE), jnp.float32)],
        ),
        compiler_params=pltpu.CompilerParams(
            dimension_semantics=("parallel", "arbitrary"),
        ),
        cost_estimate=cost,
    )(x2, t2)

    return (jnp.sum(partials) + tail_sum) / jnp.float32(n_elems)


def _ref_loss(inputs, target, weight_for_white=10.0):
    weights = jnp.ones_like(target) + target * (weight_for_white - 1.0)
    return jnp.mean(((inputs - target) ** 2) * weights)


if __name__ == "__main__":
    key = jax.random.PRNGKey(0)
    k1, k2, k3, k4, k5, k6 = jax.random.split(key, 6)

    # Primary small NCHW-style test (image-prediction loss).
    B, C, H, W = 2, 4, 16, 16
    inputs = jax.random.uniform(k1, (B, C, H, W), dtype=jnp.float32)
    target = (jax.random.uniform(k2, (B, C, H, W), dtype=jnp.float32) > 0.8).astype(
        jnp.float32
    )
    loss = weighted_mse_loss(inputs, target, weight_for_white=10.0)
    jax.block_until_ready(loss)
    ref = _ref_loss(inputs, target, 10.0)
    assert jnp.allclose(loss, ref, rtol=1e-5, atol=1e-6), (loss, ref)

    # Non-lane-aligned shape: exercises the tail reduction + in-kernel mask.
    x_b = jax.random.uniform(k3, (3, 5, 37, 17), dtype=jnp.float32)
    t_b = (jax.random.uniform(k4, (3, 5, 37, 17), dtype=jnp.float32) > 0.8).astype(
        jnp.float32
    )
    loss_b = weighted_mse_loss(x_b, t_b, weight_for_white=10.0)
    jax.block_until_ready(loss_b)
    ref_b = _ref_loss(x_b, t_b, 10.0)
    assert jnp.allclose(loss_b, ref_b, rtol=1e-5, atol=1e-6), (loss_b, ref_b)

    # Larger shape: exercises the chunked accumulation path.
    x_c = jax.random.uniform(k5, (2, 4, 160, 160), dtype=jnp.float32)
    t_c = (jax.random.uniform(k6, (2, 4, 160, 160), dtype=jnp.float32) > 0.8).astype(
        jnp.float32
    )
    loss_c = weighted_mse_loss(x_c, t_c, weight_for_white=10.0)
    jax.block_until_ready(loss_c)
    ref_c = _ref_loss(x_c, t_c, 10.0)
    assert jnp.allclose(loss_c, ref_c, rtol=1e-5, atol=1e-6), (loss_c, ref_c)

    print("KERNEL_OK")
</pallas_src>

<mosaic_0001>
module attributes {stable_mosaic.version = 11 : i64} {
  func.func @_wmse_kernel(%arg0: i32, %arg1: i32, %arg2: memref<16x128xf32, #tpu.memory_space<vmem>>, %arg3: memref<16x128xf32, #tpu.memory_space<vmem>>, %arg4: memref<1x128xf32, #tpu.memory_space<vmem>>, %arg5: memref<8x128xf32, #tpu.memory_space<vmem>>) attributes {dimension_semantics = [#tpu.dimension_semantics<parallel>, #tpu.dimension_semantics<arbitrary>], iteration_bounds = array<i64: 1, 1>, scalar_prefetch = 0 : i64, scratch_operands = 1 : i64, tpu.core_type = #tpu.core_type<tc>, window_params = [{transform_indices = @transform_0, window_bounds = array<i64: 16, 128>}, {transform_indices = @transform_1, window_bounds = array<i64: 16, 128>}, {transform_indices = @transform_2, window_bounds = array<i64: 1, 128>}]} {
    %c0_i32 = arith.constant 0 : i32
    %0 = arith.cmpi eq, %arg1, %c0_i32 : i32
    %1 = arith.extui %0 : i1 to i32
    %c0_i32_0 = arith.constant 0 : i32
    %2 = arith.cmpi ne, %1, %c0_i32_0 : i32
    scf.if %2 {
      %cst = arith.constant 0.000000e+00 : f32
      %16 = vector.broadcast %cst : f32 to vector<8x128xf32>
      %c0 = arith.constant 0 : index
      %c0_7 = arith.constant 0 : index
      %17 = vector.load %arg5[%c0, %c0_7] : memref<8x128xf32, #tpu.memory_space<vmem>>, vector<8x128xf32>
      tpu.vector_store %arg5[%c0, %c0_7], %16 {strides = array<i32>} : memref<8x128xf32, #tpu.memory_space<vmem>>, vector<8x128xf32>,
    } else {
    }
    %c1_i32 = arith.constant 1 : i32
    %3 = arith.muli %arg0, %c1_i32 : i32
    %4 = arith.addi %3, %arg1 : i32
    %c16_i32 = arith.constant 16 : i32
    %5 = arith.muli %4, %c16_i32 : i32
    %c16_i32_1 = arith.constant 16 : i32
    %6 = arith.addi %5, %c16_i32_1 : i32
    %c16_i32_2 = arith.constant 16 : i32
    %7 = arith.cmpi sle, %6, %c16_i32_2 : i32
    %8 = arith.extui %7 : i1 to i32
    %c0_i32_3 = arith.constant 0 : i32
    %9 = arith.cmpi ne, %8, %c0_i32_3 : i32
    scf.if %9 {
      %c0 = arith.constant 0 : index
      %c0_7 = arith.constant 0 : index
      %16 = vector.load %arg2[%c0, %c0_7] : memref<16x128xf32, #tpu.memory_space<vmem>>, vector<16x128xf32>
      %c0_8 = arith.constant 0 : index
      %c0_9 = arith.constant 0 : index
      %17 = vector.load %arg3[%c0_8, %c0_9] : memref<16x128xf32, #tpu.memory_space<vmem>>, vector<16x128xf32>
      %18 = arith.subf %16, %17 : vector<16x128xf32>
      %19 = arith.mulf %18, %18 : vector<16x128xf32>
      %cst = arith.constant 9.000000e+00 : f32
      %20 = vector.broadcast %cst : f32 to vector<16x128xf32>
      %21 = arith.mulf %17, %20 : vector<16x128xf32>
      %cst_10 = arith.constant 1.000000e+00 : f32
      %22 = vector.broadcast %cst_10 : f32 to vector<16x128xf32>
      %23 = arith.addf %22, %21 : vector<16x128xf32>
      %24 = arith.mulf %19, %23 : vector<16x128xf32>
      %c0_11 = arith.constant 0 : index
      %c0_12 = arith.constant 0 : index
      %25 = vector.load %arg5[%c0_11, %c0_12] : memref<8x128xf32, #tpu.memory_space<vmem>>, vector<8x128xf32>
      %26 = vector.shape_cast %24 : vector<16x128xf32> to vector<2x8x128xf32>
      %cst_13 = arith.constant dense<0.000000e+00> : vector<8x128xf32>
      %27 = vector.multi_reduction <add>, %26, %cst_13 [0] : vector<2x8x128xf32> to vector<8x128xf32>
      %28 = arith.addf %25, %27 : vector<8x128xf32>
      %c0_14 = arith.constant 0 : index
      %c0_15 = arith.constant 0 : index
      %29 = vector.load %arg5[%c0_14, %c0_15] : memref<8x128xf32, #tpu.memory_space<vmem>>, vector<8x128xf32>
      tpu.vector_store %arg5[%c0_14, %c0_15], %28 {strides = array<i32>} : memref<8x128xf32, #tpu.memory_space<vmem>>, vector<8x128xf32>,
    } else {
    }
    %true = arith.constant true
    %10 = arith.xori %7, %true : i1
    %11 = arith.extui %10 : i1 to i32
    %c0_i32_4 = arith.constant 0 : i32
    %12 = arith.cmpi ne, %11, %c0_i32_4 : i32
    scf.if %12 {
      %c0 = arith.constant 0 : index
      %c0_7 = arith.constant 0 : index
      %16 = vector.load %arg2[%c0, %c0_7] : memref<16x128xf32, #tpu.memory_space<vmem>>, vector<16x128xf32>
      %c0_8 = arith.constant 0 : index
      %c0_9 = arith.constant 0 : index
      %17 = vector.load %arg3[%c0_8, %c0_9] : memref<16x128xf32, #tpu.memory_space<vmem>>, vector<16x128xf32>
      %18 = arith.subf %16, %17 : vector<16x128xf32>
      %19 = arith.mulf %18, %18 : vector<16x128xf32>
      %cst = arith.constant 9.000000e+00 : f32
      %20 = vector.broadcast %cst : f32 to vector<16x128xf32>
      %21 = arith.mulf %17, %20 : vector<16x128xf32>
      %cst_10 = arith.constant 1.000000e+00 : f32
      %22 = vector.broadcast %cst_10 : f32 to vector<16x128xf32>
      %23 = arith.addf %22, %21 : vector<16x128xf32>
      %24 = arith.mulf %19, %23 : vector<16x128xf32>
      %25 = tpu.iota {dimensions = array<i32: 0>} : vector<16x128xi32>
      %c0_i32_11 = arith.constant 0 : i32
      %26 = arith.addi %5, %c0_i32_11 : i32
      %27 = vector.broadcast %26 : i32 to vector<16x128xi32>
      %28 = arith.addi %27, %25 : vector<16x128xi32>
      %c16_i32_12 = arith.constant 16 : i32
      %29 = vector.broadcast %c16_i32_12 : i32 to vector<16x128xi32>
      %30 = arith.cmpi slt, %28, %29 : vector<16x128xi32>
      %cst_13 = arith.constant 0.000000e+00 : f32
      %31 = vector.broadcast %cst_13 : f32 to vector<16x128xf32>
      %32 = arith.select %30, %24, %31 : vector<16x128xi1>, vector<16x128xf32>
      %c0_14 = arith.constant 0 : index
      %c0_15 = arith.constant 0 : index
      %33 = vector.load %arg5[%c0_14, %c0_15] : memref<8x128xf32, #tpu.memory_space<vmem>>, vector<8x128xf32>
      %34 = vector.shape_cast %32 : vector<16x128xf32> to vector<2x8x128xf32>
      %cst_16 = arith.constant dense<0.000000e+00> : vector<8x128xf32>
      %35 = vector.multi_reduction <add>, %34, %cst_16 [0] : vector<2x8x128xf32> to vector<8x128xf32>
      %36 = arith.addf %33, %35 : vector<8x128xf32>
      %c0_17 = arith.constant 0 : index
      %c0_18 = arith.constant 0 : index
      %37 = vector.load %arg5[%c0_17, %c0_18] : memref<8x128xf32, #tpu.memory_space<vmem>>, vector<8x128xf32>
      tpu.vector_store %arg5[%c0_17, %c0_18], %36 {strides = array<i32>} : memref<8x128xf32, #tpu.memory_space<vmem>>, vector<8x128xf32>,
    } else {
    }
    %c0_i32_5 = arith.constant 0 : i32
    %13 = arith.cmpi eq, %arg1, %c0_i32_5 : i32
    %14 = arith.extui %13 : i1 to i32
    %c0_i32_6 = arith.constant 0 : i32
    %15 = arith.cmpi ne, %14, %c0_i32_6 : i32
    scf.if %15 {
      %c0 = arith.constant 0 : index
      %c0_7 = arith.constant 0 : index
      %16 = vector.load %arg5[%c0, %c0_7] : memref<8x128xf32, #tpu.memory_space<vmem>>, vector<8x128xf32>
      %cst = arith.constant dense<0.000000e+00> : vector<128xf32>
      %17 = vector.multi_reduction <add>, %16, %cst [0] : vector<8x128xf32> to vector<128xf32>
      %18 = vector.shape_cast %17 : vector<128xf32> to vector<1x128xf32>
      %c0_8 = arith.constant 0 : index
      %c0_9 = arith.constant 0 : index
      %19 = vector.load %arg4[%c0_8, %c0_9] : memref<1x128xf32, #tpu.memory_space<vmem>>, vector<1x128xf32>
      tpu.vector_store %arg4[%c0_8, %c0_9], %18 {strides = array<i32>} : memref<1x128xf32, #tpu.memory_space<vmem>>, vector<1x128xf32>,
    } else {
    }
    return
  }
  func.func @transform_0(%arg0: i32, %arg1: i32) -> (i32, i32) {
    %c1_i32 = arith.constant 1 : i32
    %0 = arith.muli %arg0, %c1_i32 : i32
    %1 = arith.addi %0, %arg1 : i32
    %c0_i32 = arith.constant 0 : i32
    %2 = arith.minsi %1, %c0_i32 : i32
    %c0_i32_0 = arith.constant 0 : i32
    %c0_i32_1 = arith.constant 0 : i32
    return %2, %c0_i32_0 : i32, i32
  }
  func.func @transform_1(%arg0: i32, %arg1: i32) -> (i32, i32) {
    %c1_i32 = arith.constant 1 : i32
    %0 = arith.muli %arg0, %c1_i32 : i32
    %1 = arith.addi %0, %arg1 : i32
    %c0_i32 = arith.constant 0 : i32
    %2 = arith.minsi %1, %c0_i32 : i32
    %c0_i32_0 = arith.constant 0 : i32
    %c0_i32_1 = arith.constant 0 : i32
    return %2, %c0_i32_0 : i32, i32
  }
  func.func @transform_2(%arg0: i32, %arg1: i32) -> (i32, i32) {
    %c0_i32 = arith.constant 0 : i32
    %c0_i32_0 = arith.constant 0 : i32
    return %arg0, %c0_i32 : i32, i32
  }
}

</mosaic_0001>

<llo_original>
// kernel: tpu_custom_call.1
$region0: #{tpu_custom_call.1}
  #allocation0 [shape = 'u32[]', space=smem, size = 0x4, offset = 0x4, fixed_abs, tag = 'smem constant byte address 0x4 - core index']
  #allocation1 [shape = 'u32[72,128]{1,0:T(1,128)}', space=vmem, size = 0x9000, scoped, tag = 'internal scratch']
  #allocation2 [shape = 'f32[8,128]{1,0:T(8,128)}', space=vmem, size = 0x1000, scoped, tag = 'scratch operand']
  %s0 = inlined_call_operand.hbm [shape: f32[16,128], index: 0, kind: input, shape index: {}]
  %s1 = inlined_call_operand.hbm [shape: f32[16,128], index: 1, kind: input, shape index: {}]
  %s2 = inlined_call_operand.hbm [shape: f32[1,128], index: 2, kind: output, shape index: {}]
  %s3 = sld [smem:[#allocation0]]
  $region42: #{tpu_custom_call.1} parent=0
    _
  %s5 = ssub.s32 1, %s3
  %s6 = scalar_select 0, %s5, %s3
  $region1: #{tpu_custom_call.1} parent=0
    #allocation3 [shape = 'u8[8192]{0}', space=vmem, size = 0x2000, scoped, tag = 'input window, operand 0, single buffered']
    #allocation4 [shape = 's32[1]{0}', space=sflag, size = 0x4, scoped, tag = 'scoped memory for tpu_custom_call.1']
    #allocation5 [shape = 's32[1]{0}', space=sflag, size = 0x4, scoped, tag = 'scoped memory for tpu_custom_call.1']
    #allocation6 [shape = 'u8[8192]{0}', space=vmem, size = 0x2000, scoped, tag = 'input window, operand 1, single buffered']
    #allocation7 [shape = 's32[1]{0}', space=sflag, size = 0x4, scoped, tag = 'scoped memory for tpu_custom_call.1']
    #allocation8 [shape = 'u8[512]{0}', space=vmem, size = 0x400, scoped, tag = 'output window, operand 0, single buffered']
    %7 = vsyncpa [#allocation4], 0
    %8 = vsyncpa [#allocation7], 0
    %9 = vsyncpa [#allocation5], 0
    // Predicated region
    $region2: #{tpu_custom_call.1} parent=1 // pred_check
      _
    $region3: #{tpu_custom_call.1} parent=1 // pred_check_branch
      %11 = sbr.rel (0) target = $region5
    $region4: #{tpu_custom_call.1} parent=1 // pred_region
      %s12 = sadd.s32 0, 0
      %p13 = scmp.lt.s32.totalorder %s12, 0
      %s14 = scalar_select %p13, %s12, 0
      %s15 = smul.u32 2, %s14
      %17 = vsyncadd [#allocation4], 0
      %s18 = smul.addr %s15, 8
      %s19 = scalar_lea.hbm %s0, %s18
      %s20 = sshll.u32 %s19, 4
      %s21 = int_to_ptr.hbm [resolvable:$true] %s20
      %s22 = sshll.u32 [#allocation3], 4
      %s23 = int_to_ptr.vmem [resolvable:$true] %s22
      %28 = dma.hbm_to_vmem [thread:$0]  %s21, 256, %s23, [#allocation4], 128, 128, 8
    $region5: #{tpu_custom_call.1} parent=1 // pred_fallthru
      _
    // Predicated region
    $region6: #{tpu_custom_call.1} parent=1 // pred_check
      _
    $region7: #{tpu_custom_call.1} parent=1 // pred_check_branch
      %30 = sbr.rel (0) target = $region9
    $region8: #{tpu_custom_call.1} parent=1 // pred_region
      %s31 = sadd.s32 0, 0
      %p32 = scmp.lt.s32.totalorder %s31, 0
      %s33 = scalar_select %p32, %s31, 0
      %s34 = smul.u32 2, %s33
      %36 = vsyncadd [#allocation7], 0
      %s37 = smul.addr %s34, 8
      %s38 = scalar_lea.hbm %s1, %s37
      %s39 = sshll.u32 %s38, 4
      %s40 = int_to_ptr.hbm [resolvable:$true] %s39
      %s41 = sshll.u32 [#allocation6], 4
      %s42 = int_to_ptr.vmem [resolvable:$true] %s41
      %47 = dma.hbm_to_vmem [thread:$0]  %s40, 256, %s42, [#allocation7], 128, 128, 8
    $region9: #{tpu_custom_call.1} parent=1 // pred_fallthru
      _
    // Predicated region
    $region10: #{tpu_custom_call.1} parent=1 // pred_check
      _
    $region11: #{tpu_custom_call.1} parent=1 // pred_check_branch
      %49 = sbr.rel (0) target = $region13
    $region12: #{tpu_custom_call.1} parent=1 // pred_region
      %51 = dma.done [#allocation4], 256
    $region13: #{tpu_custom_call.1} parent=1 // pred_fallthru
      _
    // Predicated region
    $region14: #{tpu_custom_call.1} parent=1 // pred_check
      _
    $region15: #{tpu_custom_call.1} parent=1 // pred_check_branch
      %53 = sbr.rel (0) target = $region17
    $region16: #{tpu_custom_call.1} parent=1 // pred_region
      %55 = dma.done [#allocation7], 256
    $region17: #{tpu_custom_call.1} parent=1 // pred_fallthru
      _
    %s56 = sadd.s32 0, 0
    %p57 = scmp.lt.s32.totalorder %s56, 0
    %s58 = scalar_select %p57, %s56, 0
    %s59 = smul.u32 2, %s58
    %s60 = sadd.s32 0, 0
    %p61 = scmp.lt.s32.totalorder %s60, 0
    %s62 = scalar_select %p61, %s60, 0
    %s63 = smul.u32 2, %s62
    %p64 = scmp.eq.s32.totalorder 0, 0
    // Predicated region
    $region18: #{tpu_custom_call.1} parent=1 // pred_check
      %p65 = pneg %p64
    $region19: #{tpu_custom_call.1} parent=1 // pred_check_branch
      %67 = sbr.rel (%p65) target = $region21
    $region20: #{tpu_custom_call.1} parent=1 // pred_region
      %68 = vst [vmem:[#allocation2] sm:$0xff] 0.0
    $region21: #{tpu_custom_call.1} parent=1 // pred_fallthru
      _
    %s69 = sadd.s32 0, 0
    %s70 = smul.u32 %s69, 16
    %s71 = sadd.s32 %s70, 16
    %p72 = scmp.le.s32.totalorder %s71, 16
    // Predicated region
    $region22: #{tpu_custom_call.1} parent=1 // pred_check
      %p73 = pneg %p72
    $region23: #{tpu_custom_call.1} parent=1 // pred_check_branch
      %75 = sbr.rel (%p73) target = $region25
    $region24: #{tpu_custom_call.1} parent=1 // pred_region
      %v76 = vld [vmem:[#allocation3] sm:$0xff]
      %v77 = vld [vmem:[#allocation3 + $0x8] sm:$0xff]
      %v78 = vld [vmem:[#allocation6] sm:$0xff]
      %v79 = vld [vmem:[#allocation6 + $0x8] sm:$0xff]
      %v80 = vsub.f32 %v76, %v78
      %v81 = vsub.f32 %v77, %v79
      %v82 = vmul.f32 %v80, %v80
      %v83 = vmul.f32 %v81, %v81
      %v84 = vmul.f32 %v78, 9.0
      %v85 = vmul.f32 %v79, 9.0
      %v86 = vadd.f32 %v84, 1.0
      %v87 = vadd.f32 %v85, 1.0
      %v88 = vmul.f32 %v82, %v86
      %v89 = vmul.f32 %v83, %v87
      %v90 = vld [vmem:[#allocation2] sm:$0xff]
      %v91 = vadd.f32 %v88, %v89
      %v92 = vadd.f32 %v90, %v91
      %93 = vst [vmem:[#allocation2] sm:$0xff] %v92
    $region25: #{tpu_custom_call.1} parent=1 // pred_fallthru
      _
    %p94 = scmp.gt.s32.totalorder %s71, 16
    // Predicated region
    $region26: #{tpu_custom_call.1} parent=1 // pred_check
      %p95 = pneg %p94
    $region27: #{tpu_custom_call.1} parent=1 // pred_check_branch
      %97 = sbr.rel (%p95) target = $region29
    $region28: #{tpu_custom_call.1} parent=1 // pred_region
      %v98 = vld [vmem:[#allocation3] sm:$0xff]
      %v99 = vld [vmem:[#allocation3 + $0x8] sm:$0xff]
      %v100 = vld [vmem:[#allocation6] sm:$0xff]
      %v101 = vld [vmem:[#allocation6 + $0x8] sm:$0xff]
      %v102 = vsub.f32 %v98, %v100
      %v103 = vsub.f32 %v99, %v101
      %v104 = vmul.f32 %v102, %v102
      %v105 = vmul.f32 %v103, %v103
      %v106 = vmul.f32 %v100, 9.0
      %v107 = vmul.f32 %v101, 9.0
      %v108 = vadd.f32 %v106, 1.0
      %v109 = vadd.f32 %v107, 1.0
      %v110 = vmul.f32 %v104, %v108
      %v111 = vmul.f32 %v105, %v109
      %v112 = vlaneseq
      %v113 = vshrl.u32 %v112, 7
      %v114 = vadd.s32 %v113, 8
      %v115 = vstv %s70
      %v116 = vadd.s32 %v115, %v113
      %v117 = vadd.s32 %v115, %v114
      %vm118 = vcmp.lt.s32.totalorder %v116, 16
      %vm119 = vcmp.lt.s32.totalorder %v117, 16
      %v120 = vsel %vm118, %v110, 0.0
      %v121 = vsel %vm119, %v111, 0.0
      %v122 = vld [vmem:[#allocation2] sm:$0xff]
      %v123 = vadd.f32 %v120, %v121
      %v124 = vadd.f32 %v122, %v123
      %125 = vst [vmem:[#allocation2] sm:$0xff] %v124
    $region29: #{tpu_custom_call.1} parent=1 // pred_fallthru
      _
    // Predicated region
    $region30: #{tpu_custom_call.1} parent=1 // pred_check
      %p126 = pneg %p64
    $region31: #{tpu_custom_call.1} parent=1 // pred_check_branch
      %128 = sbr.rel (%p126) target = $region33
    $region32: #{tpu_custom_call.1} parent=1 // pred_region
      %v129 = vld [vmem:[#allocation2] sm:$0xff]
      %v130 = vrot.slane %v129, 4
      %v131 = vadd.f32 %v129, %v130
      %v132 = vrot.slane %v131, 2
      %v133 = vadd.f32 %v131, %v132
      %v134 = vrot.slane %v133, 1
      %v135 = vadd.f32 %v133, %v134
      %136 = vst [vmem:[#allocation8] sm:$0x1] %v135
    $region33: #{tpu_custom_call.1} parent=1 // pred_fallthru
      _
    // Predicated region
    $region34: #{tpu_custom_call.1} parent=1 // pred_check
      _
    $region35: #{tpu_custom_call.1} parent=1 // pred_check_branch
      %138 = sbr.rel (0) target = $region37
    $region36: #{tpu_custom_call.1} parent=1 // pred_region
      %140 = vsyncadd [#allocation5], 0
      %s142 = sshll.u32 [#allocation8], 4
      %s143 = int_to_ptr.vmem [resolvable:$true] %s142
      %s144 = sshll.u32 %s2, 4
      %s145 = int_to_ptr.hbm [resolvable:$true] %s144
      %147 = dma.vmem_to_hbm [thread:$0]  %s143, 16, %s145, [#allocation5]
    $region37: #{tpu_custom_call.1} parent=1 // pred_fallthru
      _
    // Predicated region
    $region38: #{tpu_custom_call.1} parent=1 // pred_check
      _
    $region39: #{tpu_custom_call.1} parent=1 // pred_check_branch
      %149 = sbr.rel (0) target = $region41
    $region40: #{tpu_custom_call.1} parent=1 // pred_region
      %151 = dma.done [#allocation5], 16
    $region41: #{tpu_custom_call.1} parent=1 // pred_fallthru
      _
    %152 = vsyncpa [#allocation4], 1
    %153 = vsyncpa [#allocation7], 1
    %154 = vsyncpa [#allocation5], 1

</llo_original>
